<compile_context>
chip_gen: v6e
topology: v6e:2x2x1
jax: 0.10.0
libtpu: 0.0.40
codegen_flags: <defaults>
</compile_context>

<pallas_src>
import functools

import jax
import jax.numpy as jnp
from jax.experimental import pallas as pl
from jax.experimental.pallas import tpu as pltpu


_LANE = 128
_SUBLANE = 8
# ~2 MiB per tile: with double-buffered in+out blocks (4 live buffers) this is
# <= ~8 MiB of VMEM, safe on v5e/v6e (128 MiB) and v7x (64 MiB physical).
_TARGET_TILE_BYTES = 2 * 1024 * 1024
_VMEM_LIMIT_BYTES = 32 * 1024 * 1024


def _identity_copy_kernel(x_ref, o_ref):
    # Pure elementwise passthrough: VMEM load -> VMEM store (no VPU/MXU work).
    o_ref[...] = x_ref[...]


def _lane_dense_shape(total: int):
    """Pick (rows, lane) with lane a multiple of 128 that divides `total`,
    preferring wide lanes whose row count is a sublane multiple (or 1)."""
    candidates = [l for l in (32768, 16384, 8192, 4096, 2048, 1024, 512, 256, 128)
                  if total % l == 0]
    if not candidates:
        return None
    for lane in candidates:
        rows = total // lane
        if rows == 1 or rows % _SUBLANE == 0:
            return rows, lane
    lane = candidates[-1]
    return total // lane, lane


def _aliased_copy_2d(x2: jax.Array) -> jax.Array:
    """Tiled, pipelined identity copy of a 2-D slab, output aliased to input."""
    rows, lane = x2.shape
    bpe = x2.dtype.itemsize

    # Rows per tile sized for ~_TARGET_TILE_BYTES, rounded to a sublane multiple.
    tile_r = _TARGET_TILE_BYTES // max(1, lane * bpe)
    tile_r = max(_SUBLANE, (tile_r // _SUBLANE) * _SUBLANE)
    tile_r = min(tile_r, rows)  # full extent if the array is small

    grid = (pl.cdiv(rows, tile_r),)

    return pl.pallas_call(
        _identity_copy_kernel,
        out_shape=jax.ShapeDtypeStruct((rows, lane), x2.dtype),
        grid_spec=pl.GridSpec(
            grid=grid,
            in_specs=[pl.BlockSpec((tile_r, lane), lambda i: (i, 0))],
            out_specs=pl.BlockSpec((tile_r, lane), lambda i: (i, 0)),
        ),
        input_output_aliases={0: 0},
        compiler_params=pltpu.CompilerParams(
            dimension_semantics=("parallel",),
            vmem_limit_bytes=_VMEM_LIMIT_BYTES,
        ),
    )(x2)


def _aliased_copy_full_block(x2: jax.Array) -> jax.Array:
    """Fallback for ragged sizes (total not a multiple of 128): single
    full-array block (block_shape == array shape satisfies the (8,128) rule)."""
    rows, lane = x2.shape
    return pl.pallas_call(
        _identity_copy_kernel,
        out_shape=jax.ShapeDtypeStruct((rows, lane), x2.dtype),
        grid_spec=pl.GridSpec(
            grid=(1,),
            in_specs=[pl.BlockSpec((rows, lane), lambda i: (0, 0))],
            out_specs=pl.BlockSpec((rows, lane), lambda i: (0, 0)),
        ),
        input_output_aliases={0: 0},
        compiler_params=pltpu.CompilerParams(
            vmem_limit_bytes=_VMEM_LIMIT_BYTES,
        ),
    )(x2)


def my_norm_forward(x: jax.Array, *, size: int = None, dim: int = -1,
                    eps: float = 1e-5) -> jax.Array:
    """Pallas equivalent of MyNorm.forward (identity). `size`/`dim`/`eps` are
    accepted for API parity but, like the PyTorch module, unused in forward."""
    orig_shape = x.shape
    total = int(x.size)

    if total == 0:
        return x  # nothing to copy

    shape2 = _lane_dense_shape(total)
    if shape2 is not None:
        rows, lane = shape2
        out = _aliased_copy_2d(x.reshape(rows, lane))
    else:
        # Ragged element count: keep the original trailing dim on lanes.
        lane = orig_shape[-1] if len(orig_shape) >= 1 else 1
        rows = total // lane
        out = _aliased_copy_full_block(x.reshape(rows, lane))

    return out.reshape(orig_shape)


if __name__ == "__main__":
    key = jax.random.PRNGKey(0)
    # NCHW conv-style feature map: batch=2, channels=4, spatial=16x16.
    x = jax.random.normal(key, (2, 4, 16, 16), dtype=jnp.float32)

    fwd = jax.jit(functools.partial(my_norm_forward, size=16, dim=-1, eps=1e-5))
    y = jax.block_until_ready(fwd(x))

    assert y.shape == x.shape and y.dtype == x.dtype
    assert bool(jnp.all(y == x))
    print("KERNEL_OK")
</pallas_src>

<mosaic_0001>
module attributes {stable_mosaic.version = 11 : i64} {
  func.func @_identity_copy_kernel(%arg0: i32, %arg1: memref<1x2048xf32, #tpu.memory_space<vmem>>, %arg2: memref<1x2048xf32, #tpu.memory_space<vmem>>) attributes {dimension_semantics = [#tpu.dimension_semantics<parallel>], iteration_bounds = array<i64: 1>, scalar_prefetch = 0 : i64, scratch_operands = 0 : i64, tpu.core_type = #tpu.core_type<tc>, window_params = [{transform_indices = @transform_0, window_bounds = array<i64: 1, 2048>}, {transform_indices = @transform_1, window_bounds = array<i64: 1, 2048>}]} {
    %c0 = arith.constant 0 : index
    %c0_0 = arith.constant 0 : index
    %0 = vector.load %arg1[%c0, %c0_0] : memref<1x2048xf32, #tpu.memory_space<vmem>>, vector<1x2048xf32>
    %c0_1 = arith.constant 0 : index
    %c0_2 = arith.constant 0 : index
    %1 = vector.load %arg2[%c0_1, %c0_2] : memref<1x2048xf32, #tpu.memory_space<vmem>>, vector<1x2048xf32>
    tpu.vector_store %arg2[%c0_1, %c0_2], %0 {strides = array<i32>} : memref<1x2048xf32, #tpu.memory_space<vmem>>, vector<1x2048xf32>,
    return
  }
  func.func @transform_0(%arg0: i32) -> (i32, i32) {
    %c0_i32 = arith.constant 0 : i32
    %c0_i32_0 = arith.constant 0 : i32
    return %arg0, %c0_i32 : i32, i32
  }
  func.func @transform_1(%arg0: i32) -> (i32, i32) {
    %c0_i32 = arith.constant 0 : i32
    %c0_i32_0 = arith.constant 0 : i32
    return %arg0, %c0_i32 : i32, i32
  }
}

</mosaic_0001>

<llo_original>
// kernel: my_norm_forward.1
$region0: #{my_norm_forward.1}
  #allocation0 [shape = 'u32[]', space=smem, size = 0x4, offset = 0x4, fixed_abs, tag = 'smem constant byte address 0x4 - core index']
  #allocation1 [shape = 'u32[144,128]{1,0:T(1,128)}', space=vmem, size = 0x12000, scoped, tag = 'internal scratch']
  %s0 = inlined_call_operand.vmem [shape: f32[1,2048], index: 0, kind: input, shape index: {}, may-alias: {0,1}]
  %s1 = inlined_call_operand.vmem [shape: f32[1,2048], index: 1, kind: output, shape index: {}, may-alias: {0,1}]
  %s2 = sld [smem:[#allocation0]]
  $region14: #{my_norm_forward.1} parent=0
    _
  %s4 = ssub.s32 1, %s2
  %s5 = scalar_select 0, %s4, %s2
  // Predicated region
  $region2: #{my_norm_forward.1} parent=0 // pred_check
    _
  $region3: #{my_norm_forward.1} parent=0 // pred_check_branch
    %7 = sbr.rel (0) target = $region5
  $region4: #{my_norm_forward.1} parent=0 // pred_region
    _
  $region5: #{my_norm_forward.1} parent=0 // pred_fallthru
    _
  %v8 = vld [vmem:[%s0] sm:$0xff]
  %v9 = vld [vmem:[%s0 + $0x8] sm:$0xff]
  %10 = vst [vmem:[%s1] sm:$0xff] %v8
  %11 = vst [vmem:[%s1 + $0x8] sm:$0xff] %v9
  // Predicated region
  $region6: #{my_norm_forward.1} parent=0 // pred_check
    _
  $region7: #{my_norm_forward.1} parent=0 // pred_check_branch
    %13 = sbr.rel (0) target = $region9
  $region8: #{my_norm_forward.1} parent=0 // pred_region
    _
  $region9: #{my_norm_forward.1} parent=0 // pred_fallthru
    _
  // Predicated region
  $region10: #{my_norm_forward.1} parent=0 // pred_check
    _
  $region11: #{my_norm_forward.1} parent=0 // pred_check_branch
    %15 = sbr.rel (0) target = $region13
  $region12: #{my_norm_forward.1} parent=0 // pred_region
    _
  $region13: #{my_norm_forward.1} parent=0 // pred_fallthru
    _

</llo_original>
